<compile_context>
chip_gen: v7x
topology: tpu7x:2x2x1
jax: 0.10.0
libtpu: 0.0.40
codegen_flags: <defaults>
</compile_context>

<pallas_src>
import jax
import jax.numpy as jnp
from jax import lax
from jax.experimental import pallas as pl
from jax.experimental.pallas import tpu as pltpu

LANE = 128
# Tables up to this size are DMA'd whole into VMEM and gathered with dynamic
# vector loads; bigger tables fall back to per-row HBM DMAs.  Conservative
# across v5e/v6e (128 MiB VMEM) and v7x (64 MiB VMEM).
_VMEM_TABLE_LIMIT_BYTES = 16 * 1024 * 1024


def _pick_tile(b, cap=128):
    """Largest batch tile <= cap that divides b (multiple of 8), else full b."""
    t = cap
    while t >= 8:
        if t <= b and b % t == 0:
            return t
        t //= 2
    return b


def renorm_rows(e, max_norm=1.0):
    """nn.Embedding(max_norm=...) semantics on looked-up rows (torch renorm eps)."""
    e32 = e.astype(jnp.float32)
    nrm = jnp.sqrt(jnp.sum(e32 * e32, axis=-1, keepdims=True))
    scale = jnp.where(nrm > max_norm, max_norm / (nrm + 1e-7), 1.0)
    return (e32 * scale).astype(e.dtype)


# ----------------------------------------------------------------------------
# Pallas kernel 1: fused gather + FM aggregation for one GNN layer
#   h[b] = (sum_k x[neigh[b,k]])**2 - sum_k x[neigh[b,k]]**2 + x[dst[b]]
# ----------------------------------------------------------------------------
def _fm_layer_vmem(x, dst_ids, nei_flat, b, n, tb):
    """VMEM-resident table path: rows are gathered with dynamic vector loads."""
    e, d = x.shape

    def kernel(dst_ref, nei_ref, x_ref, h_ref):
        base = pl.program_id(0) * tb

        def row_body(r, carry):
            row = base + r
            # Dynamic (1, D) vector loads straight from the VMEM-resident table
            # (no DMA descriptors).  Accumulate in f32; only ~4 vregs stay live,
            # so nothing spills (vs. materializing the (N, TB, D) block).
            tgt = x_ref[pl.ds(dst_ref[row], 1), :].astype(jnp.float32)
            s = jnp.zeros((1, d), jnp.float32)
            sq = jnp.zeros((1, d), jnp.float32)
            for k in range(n):  # small static unroll over neighbors
                v = x_ref[pl.ds(nei_ref[row * n + k], 1), :].astype(jnp.float32)
                s = s + v
                sq = sq + v * v
            h_ref[pl.ds(r, 1), :] = (s * s - sq + tgt).astype(h_ref.dtype)
            return carry

        lax.fori_loop(0, tb, row_body, 0)

    return pl.pallas_call(
        kernel,
        out_shape=jax.ShapeDtypeStruct((b, d), x.dtype),
        grid_spec=pltpu.PrefetchScalarGridSpec(
            num_scalar_prefetch=2,          # dst ids, flattened neighbor ids (SMEM)
            grid=(b // tb,),
            # Whole entity table as one VMEM block (constant index map -> one DMA).
            in_specs=[pl.BlockSpec((e, d), lambda t, dst, nei: (0, 0))],
            out_specs=pl.BlockSpec((tb, d), lambda t, dst, nei: (t, 0)),
        ),
        compiler_params=pltpu.CompilerParams(
            dimension_semantics=("parallel",)),   # batch tiles independent (v7x)
    )(dst_ids, nei_flat, x)


def _fm_layer_hbm(x, dst_ids, nei_flat, b, n, tb):
    """Fallback for tables that do not fit VMEM: per-row HBM DMA gather."""
    e, d = x.shape

    def kernel(dst_ref, nei_ref, x_hbm, h_ref, targ_buf, neigh_buf, sem):
        base = pl.program_id(0) * tb

        # TODO(synk): chunk/double-buffer the issue loop if tb*(n+1) outstanding
        # DMAs exceeds the descriptor queue depth.
        @pl.loop(0, tb)
        def _issue(r):
            row = base + r
            pltpu.make_async_copy(
                x_hbm.at[dst_ref[row]], targ_buf.at[r], sem.at[0]).start()
            for k in range(n):
                pltpu.make_async_copy(
                    x_hbm.at[nei_ref[row * n + k]], neigh_buf.at[k, r],
                    sem.at[1]).start()

        # Single sized wait per stream: descriptor byte count covers the whole
        # destination buffer, so one wait covers every outstanding row copy and
        # the compiler sees a dependence on the full buffer (not just row 0).
        pltpu.make_async_copy(x_hbm.at[pl.ds(0, tb)], targ_buf, sem.at[0]).wait()
        pltpu.make_async_copy(neigh_buf, neigh_buf, sem.at[1]).wait()

        # Loop-accumulate over the neighbor axis: one (tb, d) tile live at a time
        # (no (N, TB, D) materialization -> no vreg spills).
        def acc(k, carry):
            s, sq = carry
            v = neigh_buf[k].astype(jnp.float32)
            return s + v, sq + v * v

        zero = jnp.zeros((tb, d), jnp.float32)
        s, sq = lax.fori_loop(0, n, acc, (zero, zero), unroll=True)
        h_ref[...] = (s * s - sq + targ_buf[...].astype(jnp.float32)).astype(h_ref.dtype)

    return pl.pallas_call(
        kernel,
        out_shape=jax.ShapeDtypeStruct((b, d), x.dtype),
        grid_spec=pltpu.PrefetchScalarGridSpec(
            num_scalar_prefetch=2,
            grid=(b // tb,),
            in_specs=[pl.BlockSpec(memory_space=pl.ANY)],   # table stays in HBM
            out_specs=pl.BlockSpec((tb, d), lambda t, dst, nei: (t, 0)),
            scratch_shapes=[
                pltpu.VMEM((tb, d), x.dtype),
                pltpu.VMEM((n, tb, d), x.dtype),
                pltpu.SemaphoreType.DMA((2,)),
            ],
        ),
        compiler_params=pltpu.CompilerParams(
            dimension_semantics=("parallel",)),
    )(dst_ids, nei_flat, x)


def fm_layer(x, dst_ids, neigh_ids):
    """x: [E, D] entity table, dst_ids: [B], neigh_ids: [B, N] -> h [B, D]."""
    b, n = neigh_ids.shape
    tb = _pick_tile(b)
    nei_flat = neigh_ids.reshape(-1)   # 1-D so the SMEM copy is not padded to 128 lanes
    if x.size * x.dtype.itemsize <= _VMEM_TABLE_LIMIT_BYTES:
        return _fm_layer_vmem(x, dst_ids, nei_flat, b, n, tb)
    return _fm_layer_hbm(x, dst_ids, nei_flat, b, n, tb)


# ----------------------------------------------------------------------------
# Pallas kernel 2: in-place row write-back into the entity table (aliased)
# ----------------------------------------------------------------------------
def scatter_rows(x, dst_ids, h):
    """Write h[b] into x[dst_ids[b]] in place (table aliased, no full copy)."""
    b, d = h.shape
    tb = _pick_tile(b)

    def kernel(dst_ref, h_ref, x_in, x_out, sem):
        del x_in  # only present so the HBM table can be aliased to the output
        base = pl.program_id(0) * tb

        @pl.loop(0, tb)
        def _issue(r):
            pltpu.make_async_copy(
                h_ref.at[r], x_out.at[dst_ref[base + r]], sem.at[0]).start()

        # Single sized wait covering all tb row write-backs (tb*d*4 bytes).
        pltpu.make_async_copy(h_ref, x_out.at[pl.ds(0, tb)], sem.at[0]).wait()

    return pl.pallas_call(
        kernel,
        out_shape=jax.ShapeDtypeStruct(x.shape, x.dtype),
        grid=(b // tb,),
        in_specs=[
            pl.BlockSpec(memory_space=pltpu.MemorySpace.SMEM),  # dst_ids
            pl.BlockSpec((tb, d), lambda t: (t, 0)),            # h tiles
            pl.BlockSpec(memory_space=pl.ANY),                  # entity table
        ],
        out_specs=pl.BlockSpec(memory_space=pl.ANY),
        scratch_shapes=[pltpu.SemaphoreType.DMA((1,))],
        input_output_aliases={2: 0},   # update the table in place
        # dst ids are unique within a layer -> disjoint row writes -> parallel
        # is safe and lets v7x's two TensorCores split the write-back.
        compiler_params=pltpu.CompilerParams(
            dimension_semantics=("parallel",)),
    )(dst_ids, h, x)


# ----------------------------------------------------------------------------
# Pallas kernel 3: prediction head (VMEM gather + scale-after-dot renorm)
#   logit[b] = sigmoid( scale(||u||) * sum_d users[u[b], d] * x[i[b], d] )
# ----------------------------------------------------------------------------
def predict_logits(user_emb, x, u, i):
    """user_emb: [n_users, D], x: [E, D], u/i: [B] -> logits [B]."""
    b = u.shape[0]
    e, d = x.shape
    nu = user_emb.shape[0]
    tb = LANE if b % LANE == 0 else b   # lane-dense output tile
    # TODO(synk): add an HBM row-DMA fallback (as in _fm_layer_hbm) for tables
    # that do not fit VMEM; demo tables are tiny so only the VMEM path is used.

    def kernel(u_ref, i_ref, users_ref, x_ref, out_ref, ubuf, ibuf):
        base = pl.program_id(0) * tb

        def gather(r, carry):
            row = base + r
            ubuf[pl.ds(r, 1), :] = users_ref[pl.ds(u_ref[row], 1), :]
            ibuf[pl.ds(r, 1), :] = x_ref[pl.ds(i_ref[row], 1), :]
            return carry

        lax.fori_loop(0, tb, gather, 0)

        us = ubuf[...].astype(jnp.float32)                     # (TB, D)
        it = ibuf[...].astype(jnp.float32)                     # (TB, D)
        ones_row = jnp.ones((1, d), jnp.float32)
        dims = (((1,), (1,)), ((), ()))
        # Row-sums on the MXU; results land directly on lanes -> (1, TB) slab.
        uv = lax.dot_general(ones_row, us * it, dims,
                             preferred_element_type=jnp.float32)   # raw dot
        n2 = lax.dot_general(ones_row, us * us, dims,
                             preferred_element_type=jnp.float32)   # ||u||^2
        # max_norm=1 renorm applied as a per-row scalar AFTER the dot
        # (mathematically identical up to fp reassociation).
        nrm = jnp.sqrt(n2)
        scale = jnp.where(nrm > 1.0, 1.0 / (nrm + 1e-7), 1.0)
        out_ref[...] = jax.nn.sigmoid(uv * scale)

    out = pl.pallas_call(
        kernel,
        out_shape=jax.ShapeDtypeStruct((1, b), jnp.float32),
        grid_spec=pltpu.PrefetchScalarGridSpec(
            num_scalar_prefetch=2,
            grid=(b // tb,),
            in_specs=[pl.BlockSpec((nu, d), lambda t, uu, ii: (0, 0)),
                      pl.BlockSpec((e, d), lambda t, uu, ii: (0, 0))],
            out_specs=pl.BlockSpec((1, tb), lambda t, uu, ii: (0, t)),
            scratch_shapes=[pltpu.VMEM((tb, d), user_emb.dtype),
                            pltpu.VMEM((tb, d), x.dtype)],
        ),
        compiler_params=pltpu.CompilerParams(
            dimension_semantics=("parallel",)),
    )(u, i, user_emb, x)
    return out[0]


# ----------------------------------------------------------------------------
# Full GFM forward
# ----------------------------------------------------------------------------
def gfm_forward(user_emb, entity_emb, u, i, blocks):
    """
    user_emb:   [n_users, dim]   (dim must be a multiple of 128 / lane width)
    entity_emb: [n_entitys, dim]
    u, i:       [batch] int32 indices
    blocks:     list of (dst_ids [B], neigh_ids [B, n_neighbor]) per GNN layer
    """
    assert entity_emb.shape[1] % LANE == 0, "pad embedding dim to a multiple of 128"

    # max_norm=1 renorm applied ONCE to exactly the rows that participate in
    # this forward (instead of a full-table pass).  Doing it before any layer
    # preserves the reference's "renorm once, never re-renorm written rows"
    # semantics without tracking per-row written flags.
    touched = jnp.concatenate(
        [i]
        + [jnp.reshape(dst, (-1,)) for dst, _ in blocks]
        + [jnp.reshape(nei, (-1,)) for _, nei in blocks])
    x = entity_emb.at[touched].set(renorm_rows(entity_emb[touched]))

    # NOTE: the dst write-back is deliberately NOT fused into fm_layer: a dst
    # row may appear as a neighbor of another row in the same layer, and the
    # reference computes every h from the pre-update table.
    for dst_ids, neigh_ids in blocks:
        h = fm_layer(x, dst_ids, neigh_ids)   # fused gather + FM aggregation
        x = scatter_rows(x, dst_ids, h)       # in-place row write-back (aliased)

    return predict_logits(user_emb, x, u, i)  # gather + renorm + dot + sigmoid


# ----------------------------------------------------------------------------
# Pure-JAX reference of the same math
# ----------------------------------------------------------------------------
def ref_forward(user_emb, entity_emb, u, i, blocks):
    touched = jnp.concatenate(
        [i]
        + [jnp.reshape(dst, (-1,)) for dst, _ in blocks]
        + [jnp.reshape(nei, (-1,)) for _, nei in blocks])
    x = entity_emb.at[touched].set(renorm_rows(entity_emb[touched]))
    for dst_ids, neigh_ids in blocks:
        neigh = x[neigh_ids].astype(jnp.float32)
        target = x[dst_ids].astype(jnp.float32)
        h = jnp.sum(neigh, axis=1) ** 2 - jnp.sum(neigh * neigh, axis=1) + target
        x = x.at[dst_ids].set(h.astype(x.dtype))
    users = renorm_rows(user_emb[u].astype(jnp.float32))
    items = x[i].astype(jnp.float32)
    return jax.nn.sigmoid(jnp.sum(users * items, axis=-1))


# ----------------------------------------------------------------------------
# Demo
# ----------------------------------------------------------------------------
if __name__ == "__main__":
    key = jax.random.PRNGKey(0)
    n_users, n_entitys, dim = 64, 512, 128
    batch, n_neighbor, n_layers = 256, 8, 2

    keys = jax.random.split(key, 3 + 2 * n_layers)
    user_emb = jax.random.normal(keys[0], (n_users, dim), dtype=jnp.float32)
    entity_emb = jax.random.normal(keys[1], (n_entitys, dim), dtype=jnp.float32)
    u = jax.random.randint(keys[2], (batch,), 0, n_users, dtype=jnp.int32)

    # Dense neighbor tables per layer.  dst ids are unique within a layer so
    # the row write-back is order-independent (duplicate dst ids would make the
    # scatter last-writer-wins, same caveat as the reference XLA scatter).
    blocks = []
    for k in range(n_layers):
        dst = jax.random.permutation(keys[3 + 2 * k], n_entitys)[:batch]
        dst = dst.astype(jnp.int32)
        nei = jax.random.randint(keys[4 + 2 * k], (batch, n_neighbor),
                                 0, n_entitys, dtype=jnp.int32)
        blocks.append((dst, nei))
    i = blocks[-1][0]   # target items = last layer's dst nodes

    fwd = jax.jit(gfm_forward)
    logit = jax.block_until_ready(fwd(user_emb, entity_emb, u, i, blocks))

    ref = ref_forward(user_emb, entity_emb, u, i, blocks)
    assert logit.shape == (batch,)
    max_err = float(jnp.max(jnp.abs(logit - ref)))
    assert jnp.allclose(logit, ref, atol=1e-4, rtol=1e-4), f"max abs err {max_err}"

    print("KERNEL_OK")
</pallas_src>

<mosaic_0001>
module attributes {stable_mosaic.version = 11 : i64} {
  func.func @kernel(%arg0: i32, %arg1: memref<256xi32, #tpu.memory_space<smem>>, %arg2: memref<2048xi32, #tpu.memory_space<smem>>, %arg3: memref<512x128xf32, #tpu.memory_space<vmem>>, %arg4: memref<128x128xf32, #tpu.memory_space<vmem>>) attributes {dimension_semantics = [#tpu.dimension_semantics<parallel>], iteration_bounds = array<i64: 2>, scalar_prefetch = 2 : i64, scratch_operands = 0 : i64, tpu.core_type = #tpu.core_type<tc>, window_params = [{pipeline_mode = #tpu.pipeline_mode<synchronous>, transform_indices = @transform_0, window_bounds = array<i64: 512, 128>}, {transform_indices = @transform_1, window_bounds = array<i64: 128, 128>}]} {
    %c128_i32 = arith.constant 128 : i32
    %0 = arith.muli %arg0, %c128_i32 : i32
    %c0_i32 = arith.constant 0 : i32
    %c128_i32_0 = arith.constant 128 : i32
    %1 = arith.addi %c0_i32, %c128_i32_0 : i32
    %c1_i32 = arith.constant 1 : i32
    scf.for %arg5 = %c0_i32 to %1 step %c1_i32  : i32 {
      %2 = arith.addi %0, %arg5 : i32
      %3 = arith.index_cast %2 : i32 to index
      %4 = memref.load %arg1[%3] : memref<256xi32, #tpu.memory_space<smem>>
      %5 = arith.index_cast %4 : i32 to index
      %c0 = arith.constant 0 : index
      %6 = vector.load %arg3[%5, %c0] : memref<512x128xf32, #tpu.memory_space<vmem>>, vector<1x128xf32>
      %cst = arith.constant 0.000000e+00 : f32
      %7 = vector.broadcast %cst : f32 to vector<1x128xf32>
      %cst_2 = arith.constant 0.000000e+00 : f32
      %8 = vector.broadcast %cst_2 : f32 to vector<1x128xf32>
      %c8_i32 = arith.constant 8 : i32
      %9 = arith.muli %2, %c8_i32 : i32
      %c0_i32_3 = arith.constant 0 : i32
      %10 = arith.addi %9, %c0_i32_3 : i32
      %11 = arith.index_cast %10 : i32 to index
      %12 = memref.load %arg2[%11] : memref<2048xi32, #tpu.memory_space<smem>>
      %13 = arith.index_cast %12 : i32 to index
      %c0_4 = arith.constant 0 : index
      %14 = vector.load %arg3[%13, %c0_4] : memref<512x128xf32, #tpu.memory_space<vmem>>, vector<1x128xf32>
      %15 = arith.addf %7, %14 : vector<1x128xf32>
      %16 = arith.mulf %14, %14 : vector<1x128xf32>
      %17 = arith.addf %8, %16 : vector<1x128xf32>
      %c8_i32_5 = arith.constant 8 : i32
      %18 = arith.muli %2, %c8_i32_5 : i32
      %c1_i32_6 = arith.constant 1 : i32
      %19 = arith.addi %18, %c1_i32_6 : i32
      %20 = arith.index_cast %19 : i32 to index
      %21 = memref.load %arg2[%20] : memref<2048xi32, #tpu.memory_space<smem>>
      %22 = arith.index_cast %21 : i32 to index
      %c0_7 = arith.constant 0 : index
      %23 = vector.load %arg3[%22, %c0_7] : memref<512x128xf32, #tpu.memory_space<vmem>>, vector<1x128xf32>
      %24 = arith.addf %15, %23 : vector<1x128xf32>
      %25 = arith.mulf %23, %23 : vector<1x128xf32>
      %26 = arith.addf %17, %25 : vector<1x128xf32>
      %c8_i32_8 = arith.constant 8 : i32
      %27 = arith.muli %2, %c8_i32_8 : i32
      %c2_i32 = arith.constant 2 : i32
      %28 = arith.addi %27, %c2_i32 : i32
      %29 = arith.index_cast %28 : i32 to index
      %30 = memref.load %arg2[%29] : memref<2048xi32, #tpu.memory_space<smem>>
      %31 = arith.index_cast %30 : i32 to index
      %c0_9 = arith.constant 0 : index
      %32 = vector.load %arg3[%31, %c0_9] : memref<512x128xf32, #tpu.memory_space<vmem>>, vector<1x128xf32>
      %33 = arith.addf %24, %32 : vector<1x128xf32>
      %34 = arith.mulf %32, %32 : vector<1x128xf32>
      %35 = arith.addf %26, %34 : vector<1x128xf32>
      %c8_i32_10 = arith.constant 8 : i32
      %36 = arith.muli %2, %c8_i32_10 : i32
      %c3_i32 = arith.constant 3 : i32
      %37 = arith.addi %36, %c3_i32 : i32
      %38 = arith.index_cast %37 : i32 to index
      %39 = memref.load %arg2[%38] : memref<2048xi32, #tpu.memory_space<smem>>
      %40 = arith.index_cast %39 : i32 to index
      %c0_11 = arith.constant 0 : index
      %41 = vector.load %arg3[%40, %c0_11] : memref<512x128xf32, #tpu.memory_space<vmem>>, vector<1x128xf32>
      %42 = arith.addf %33, %41 : vector<1x128xf32>
      %43 = arith.mulf %41, %41 : vector<1x128xf32>
      %44 = arith.addf %35, %43 : vector<1x128xf32>
      %c8_i32_12 = arith.constant 8 : i32
      %45 = arith.muli %2, %c8_i32_12 : i32
      %c4_i32 = arith.constant 4 : i32
      %46 = arith.addi %45, %c4_i32 : i32
      %47 = arith.index_cast %46 : i32 to index
      %48 = memref.load %arg2[%47] : memref<2048xi32, #tpu.memory_space<smem>>
      %49 = arith.index_cast %48 : i32 to index
      %c0_13 = arith.constant 0 : index
      %50 = vector.load %arg3[%49, %c0_13] : memref<512x128xf32, #tpu.memory_space<vmem>>, vector<1x128xf32>
      %51 = arith.addf %42, %50 : vector<1x128xf32>
      %52 = arith.mulf %50, %50 : vector<1x128xf32>
      %53 = arith.addf %44, %52 : vector<1x128xf32>
      %c8_i32_14 = arith.constant 8 : i32
      %54 = arith.muli %2, %c8_i32_14 : i32
      %c5_i32 = arith.constant 5 : i32
      %55 = arith.addi %54, %c5_i32 : i32
      %56 = arith.index_cast %55 : i32 to index
      %57 = memref.load %arg2[%56] : memref<2048xi32, #tpu.memory_space<smem>>
      %58 = arith.index_cast %57 : i32 to index
      %c0_15 = arith.constant 0 : index
      %59 = vector.load %arg3[%58, %c0_15] : memref<512x128xf32, #tpu.memory_space<vmem>>, vector<1x128xf32>
      %60 = arith.addf %51, %59 : vector<1x128xf32>
      %61 = arith.mulf %59, %59 : vector<1x128xf32>
      %62 = arith.addf %53, %61 : vector<1x128xf32>
      %c8_i32_16 = arith.constant 8 : i32
      %63 = arith.muli %2, %c8_i32_16 : i32
      %c6_i32 = arith.constant 6 : i32
      %64 = arith.addi %63, %c6_i32 : i32
      %65 = arith.index_cast %64 : i32 to index
      %66 = memref.load %arg2[%65] : memref<2048xi32, #tpu.memory_space<smem>>
      %67 = arith.index_cast %66 : i32 to index
      %c0_17 = arith.constant 0 : index
      %68 = vector.load %arg3[%67, %c0_17] : memref<512x128xf32, #tpu.memory_space<vmem>>, vector<1x128xf32>
      %69 = arith.addf %60, %68 : vector<1x128xf32>
      %70 = arith.mulf %68, %68 : vector<1x128xf32>
      %71 = arith.addf %62, %70 : vector<1x128xf32>
      %c8_i32_18 = arith.constant 8 : i32
      %72 = arith.muli %2, %c8_i32_18 : i32
      %c7_i32 = arith.constant 7 : i32
      %73 = arith.addi %72, %c7_i32 : i32
      %74 = arith.index_cast %73 : i32 to index
      %75 = memref.load %arg2[%74] : memref<2048xi32, #tpu.memory_space<smem>>
      %76 = arith.index_cast %75 : i32 to index
      %c0_19 = arith.constant 0 : index
      %77 = vector.load %arg3[%76, %c0_19] : memref<512x128xf32, #tpu.memory_space<vmem>>, vector<1x128xf32>
      %78 = arith.addf %69, %77 : vector<1x128xf32>
      %79 = arith.mulf %77, %77 : vector<1x128xf32>
      %80 = arith.addf %71, %79 : vector<1x128xf32>
      %81 = arith.mulf %78, %78 : vector<1x128xf32>
      %82 = arith.subf %81, %80 : vector<1x128xf32>
      %83 = arith.addf %82, %6 : vector<1x128xf32>
      %84 = arith.index_cast %arg5 : i32 to index
      %c0_20 = arith.constant 0 : index
      %85 = vector.load %arg4[%84, %c0_20] : memref<128x128xf32, #tpu.memory_space<vmem>>, vector<1x128xf32>
      tpu.vector_store %arg4[%84, %c0_20], %83 {strides = array<i32>} : memref<128x128xf32, #tpu.memory_space<vmem>>, vector<1x128xf32>,
    }
    %c128_i32_1 = arith.constant 128 : i32
    return
  }
  func.func @transform_0(%arg0: i32, %arg1: memref<256xi32, #tpu.memory_space<smem>>, %arg2: memref<2048xi32, #tpu.memory_space<smem>>) -> (i32, i32) {
    %c0_i32 = arith.constant 0 : i32
    %c0_i32_0 = arith.constant 0 : i32
    %c0_i32_1 = arith.constant 0 : i32
    return %c0_i32, %c0_i32_0 : i32, i32
  }
  func.func @transform_1(%arg0: i32, %arg1: memref<256xi32, #tpu.memory_space<smem>>, %arg2: memref<2048xi32, #tpu.memory_space<smem>>) -> (i32, i32) {
    %c0_i32 = arith.constant 0 : i32
    %c0_i32_0 = arith.constant 0 : i32
    return %arg0, %c0_i32 : i32, i32
  }
}

module attributes {stable_mosaic.version = 11 : i64} {
  func.func @kernel(%arg0: i32, %arg1: memref<256xi32, #tpu.memory_space<smem>>, %arg2: memref<128x128xf32, #tpu.memory_space<vmem>>, %arg3: memref<512x128xf32, #tpu.memory_space<any>>, %arg4: memref<512x128xf32, #tpu.memory_space<any>>, %arg5: memref<1x!tpu.dma_semaphore, #tpu.memory_space<semaphore_mem>>) attributes {dimension_semantics = [#tpu.dimension_semantics<parallel>], iteration_bounds = array<i64: 2>, scalar_prefetch = 0 : i64, scratch_operands = 1 : i64, tpu.core_type = #tpu.core_type<tc>, window_params = [{transform_indices = @transform_0, window_bounds = array<i64: 256>}, {transform_indices = @transform_1, window_bounds = array<i64: 128, 128>}, {}, {}]} {
    %c128_i32 = arith.constant 128 : i32
    %0 = arith.muli %arg0, %c128_i32 : i32
    %c0_i32 = arith.constant 0 : i32
    %c128_i32_0 = arith.constant 128 : i32
    %1 = arith.addi %c0_i32, %c128_i32_0 : i32
    %c1_i32 = arith.constant 1 : i32
    scf.for %arg6 = %c0_i32 to %1 step %c1_i32  : i32 {
      %c1_i32_5 = arith.constant 1 : i32
      %5 = arith.muli %arg6, %c1_i32_5 : i32
      %c0_i32_6 = arith.constant 0 : i32
      %6 = arith.addi %c0_i32_6, %5 : i32
      %7 = arith.addi %0, %6 : i32
      %8 = arith.index_cast %7 : i32 to index
      %9 = memref.load %arg1[%8] : memref<256xi32, #tpu.memory_space<smem>>
      %c0_i32_7 = arith.constant 0 : i32
      %c0_i32_8 = arith.constant 0 : i32
      %10 = tpu.memref_slice %arg2[%6, %c0_i32_8] : memref<128x128xf32, #tpu.memory_space<vmem>> -> memref<1x128xf32, #tpu.memory_space<vmem>>
      %11 = tpu.memref_squeeze %10 : memref<1x128xf32, #tpu.memory_space<vmem>> -> memref<128xf32, #tpu.memory_space<vmem>>
      %c0_i32_9 = arith.constant 0 : i32
      %12 = tpu.memref_slice %arg4[%9, %c0_i32_9] : memref<512x128xf32, #tpu.memory_space<any>> -> memref<1x128xf32, #tpu.memory_space<any>>
      %13 = tpu.memref_squeeze %12 : memref<1x128xf32, #tpu.memory_space<any>> -> memref<128xf32, #tpu.memory_space<any>>
      %14 = tpu.memref_slice %arg5[%c0_i32_7] : memref<1x!tpu.dma_semaphore, #tpu.memory_space<semaphore_mem>> -> memref<1x!tpu.dma_semaphore, #tpu.memory_space<semaphore_mem>>
      %15 = tpu.memref_squeeze %14 : memref<1x!tpu.dma_semaphore, #tpu.memory_space<semaphore_mem>> -> memref<!tpu.dma_semaphore, #tpu.memory_space<semaphore_mem>>
      tpu.enqueue_dma source(%11 : memref<128xf32, #tpu.memory_space<vmem>>) target(%13 : memref<128xf32, #tpu.memory_space<any>>) target_semaphore(%15 : memref<!tpu.dma_semaphore, #tpu.memory_space<semaphore_mem>>)
    }
    %c128_i32_1 = arith.constant 128 : i32
    %c0_i32_2 = arith.constant 0 : i32
    %c0_i32_3 = arith.constant 0 : i32
    %c0_i32_4 = arith.constant 0 : i32
    %2 = tpu.memref_slice %arg4[%c0_i32_3, %c0_i32_4] : memref<512x128xf32, #tpu.memory_space<any>> -> memref<128x128xf32, #tpu.memory_space<any>>
    %3 = tpu.memref_slice %arg5[%c0_i32_2] : memref<1x!tpu.dma_semaphore, #tpu.memory_space<semaphore_mem>> -> memref<1x!tpu.dma_semaphore, #tpu.memory_space<semaphore_mem>>
    %4 = tpu.memref_squeeze %3 : memref<1x!tpu.dma_semaphore, #tpu.memory_space<semaphore_mem>> -> memref<!tpu.dma_semaphore, #tpu.memory_space<semaphore_mem>>
    tpu.wait_dma2 semaphore(%4 : memref<!tpu.dma_semaphore, #tpu.memory_space<semaphore_mem>>) src(%arg2 : memref<128x128xf32, #tpu.memory_space<vmem>>) dst(%2 : memref<128x128xf32, #tpu.memory_space<any>>)
    return
  }
  func.func @transform_0(%arg0: i32) -> i32 {
    %c0_i32 = arith.constant 0 : i32
    %c0_i32_0 = arith.constant 0 : i32
    return %c0_i32 : i32
  }
  func.func @transform_1(%arg0: i32) -> (i32, i32) {
    %c0_i32 = arith.constant 0 : i32
    %c0_i32_0 = arith.constant 0 : i32
    return %arg0, %c0_i32 : i32, i32
  }
}

module attributes {stable_mosaic.version = 11 : i64} {
  func.func @kernel(%arg0: i32, %arg1: memref<256xi32, #tpu.memory_space<smem>>, %arg2: memref<256xi32, #tpu.memory_space<smem>>, %arg3: memref<64x128xf32, #tpu.memory_space<vmem>>, %arg4: memref<512x128xf32, #tpu.memory_space<vmem>>, %arg5: memref<1x128xf32, #tpu.memory_space<vmem>>, %arg6: memref<128x128xf32, #tpu.memory_space<vmem>>, %arg7: memref<128x128xf32, #tpu.memory_space<vmem>>) attributes {dimension_semantics = [#tpu.dimension_semantics<parallel>], iteration_bounds = array<i64: 2>, scalar_prefetch = 2 : i64, scratch_operands = 2 : i64, tpu.core_type = #tpu.core_type<tc>, window_params = [{pipeline_mode = #tpu.pipeline_mode<synchronous>, transform_indices = @transform_0, window_bounds = array<i64: 64, 128>}, {pipeline_mode = #tpu.pipeline_mode<synchronous>, transform_indices = @transform_1, window_bounds = array<i64: 512, 128>}, {transform_indices = @transform_2, window_bounds = array<i64: 1, 128>}]} {
    %c128_i32 = arith.constant 128 : i32
    %0 = arith.muli %arg0, %c128_i32 : i32
    %c0_i32 = arith.constant 0 : i32
    %c128_i32_0 = arith.constant 128 : i32
    %1 = arith.addi %c0_i32, %c128_i32_0 : i32
    %c1_i32 = arith.constant 1 : i32
    scf.for %arg8 = %c0_i32 to %1 step %c1_i32  : i32 {
      %25 = arith.addi %0, %arg8 : i32
      %26 = arith.index_cast %25 : i32 to index
      %27 = memref.load %arg1[%26] : memref<256xi32, #tpu.memory_space<smem>>
      %28 = arith.index_cast %27 : i32 to index
      %c0_14 = arith.constant 0 : index
      %29 = vector.load %arg3[%28, %c0_14] : memref<64x128xf32, #tpu.memory_space<vmem>>, vector<1x128xf32>
      %30 = arith.index_cast %arg8 : i32 to index
      %c0_15 = arith.constant 0 : index
      %31 = vector.load %arg6[%30, %c0_15] : memref<128x128xf32, #tpu.memory_space<vmem>>, vector<1x128xf32>
      tpu.vector_store %arg6[%30, %c0_15], %29 {strides = array<i32>} : memref<128x128xf32, #tpu.memory_space<vmem>>, vector<1x128xf32>,
      %32 = arith.index_cast %25 : i32 to index
      %33 = memref.load %arg2[%32] : memref<256xi32, #tpu.memory_space<smem>>
      %34 = arith.index_cast %33 : i32 to index
      %c0_16 = arith.constant 0 : index
      %35 = vector.load %arg4[%34, %c0_16] : memref<512x128xf32, #tpu.memory_space<vmem>>, vector<1x128xf32>
      %36 = arith.index_cast %arg8 : i32 to index
      %c0_17 = arith.constant 0 : index
      %37 = vector.load %arg7[%36, %c0_17] : memref<128x128xf32, #tpu.memory_space<vmem>>, vector<1x128xf32>
      tpu.vector_store %arg7[%36, %c0_17], %35 {strides = array<i32>} : memref<128x128xf32, #tpu.memory_space<vmem>>, vector<1x128xf32>,
    }
    %c128_i32_1 = arith.constant 128 : i32
    %c0 = arith.constant 0 : index
    %c0_2 = arith.constant 0 : index
    %2 = vector.load %arg6[%c0, %c0_2] : memref<128x128xf32, #tpu.memory_space<vmem>>, vector<128x128xf32>
    %c0_3 = arith.constant 0 : index
    %c0_4 = arith.constant 0 : index
    %3 = vector.load %arg7[%c0_3, %c0_4] : memref<128x128xf32, #tpu.memory_space<vmem>>, vector<128x128xf32>
    %cst = arith.constant 1.000000e+00 : f32
    %4 = vector.broadcast %cst : f32 to vector<1x128xf32>
    %5 = arith.mulf %2, %3 : vector<128x128xf32>
    %cst_5 = arith.constant dense<0.000000e+00> : vector<1x128xf32>
    %6 = tpu.matmul %4, %5, %cst_5 {dimension_numbers = #tpu.dot_dimension_numbers<[1], [1], [0], [0], [0, 0, 1, 0], [], []>} : vector<1x128xf32>, vector<128x128xf32>, vector<1x128xf32> -> vector<1x128xf32>
    %7 = arith.mulf %2, %2 : vector<128x128xf32>
    %cst_6 = arith.constant dense<0.000000e+00> : vector<1x128xf32>
    %8 = tpu.matmul %4, %7, %cst_6 {dimension_numbers = #tpu.dot_dimension_numbers<[1], [1], [0], [0], [0, 0, 1, 0], [], []>} : vector<1x128xf32>, vector<128x128xf32>, vector<1x128xf32> -> vector<1x128xf32>
    %9 = math.sqrt %8 : vector<1x128xf32>
    %cst_7 = arith.constant 1.000000e+00 : f32
    %10 = vector.broadcast %cst_7 : f32 to vector<1x128xf32>
    %11 = arith.cmpf ogt, %9, %10 : vector<1x128xf32>
    %cst_8 = arith.constant 1.000000e-07 : f32
    %12 = vector.broadcast %cst_8 : f32 to vector<1x128xf32>
    %13 = arith.addf %9, %12 : vector<1x128xf32>
    %cst_9 = arith.constant 1.000000e+00 : f32
    %14 = vector.broadcast %cst_9 : f32 to vector<1x128xf32>
    %15 = arith.divf %14, %13 : vector<1x128xf32>
    %cst_10 = arith.constant 1.000000e+00 : f32
    %16 = vector.broadcast %cst_10 : f32 to vector<1x128xf32>
    %17 = arith.select %11, %15, %16 : vector<1x128xi1>, vector<1x128xf32>
    %18 = arith.mulf %6, %17 : vector<1x128xf32>
    %19 = arith.negf %18 : vector<1x128xf32>
    %20 = math.exp %19 : vector<1x128xf32>
    %cst_11 = arith.constant 1.000000e+00 : f32
    %21 = vector.broadcast %cst_11 : f32 to vector<1x128xf32>
    %22 = arith.addf %21, %20 : vector<1x128xf32>
    %23 = arith.divf %21, %22 : vector<1x128xf32>
    %c0_12 = arith.constant 0 : index
    %c0_13 = arith.constant 0 : index
    %24 = vector.load %arg5[%c0_12, %c0_13] : memref<1x128xf32, #tpu.memory_space<vmem>>, vector<1x128xf32>
    tpu.vector_store %arg5[%c0_12, %c0_13], %23 {strides = array<i32>} : memref<1x128xf32, #tpu.memory_space<vmem>>, vector<1x128xf32>,
    return
  }
  func.func @transform_0(%arg0: i32, %arg1: memref<256xi32, #tpu.memory_space<smem>>, %arg2: memref<256xi32, #tpu.memory_space<smem>>) -> (i32, i32) {
    %c0_i32 = arith.constant 0 : i32
    %c0_i32_0 = arith.constant 0 : i32
    %c0_i32_1 = arith.constant 0 : i32
    return %c0_i32, %c0_i32_0 : i32, i32
  }
  func.func @transform_1(%arg0: i32, %arg1: memref<256xi32, #tpu.memory_space<smem>>, %arg2: memref<256xi32, #tpu.memory_space<smem>>) -> (i32, i32) {
    %c0_i32 = arith.constant 0 : i32
    %c0_i32_0 = arith.constant 0 : i32
    %c0_i32_1 = arith.constant 0 : i32
    return %c0_i32, %c0_i32_0 : i32, i32
  }
  func.func @transform_2(%arg0: i32, %arg1: memref<256xi32, #tpu.memory_space<smem>>, %arg2: memref<256xi32, #tpu.memory_space<smem>>) -> (i32, i32) {
    %c0_i32 = arith.constant 0 : i32
    %c0_i32_0 = arith.constant 0 : i32
    return %c0_i32, %arg0 : i32, i32
  }
}

</mosaic_0001>

<llo_original>
// kernel: gfm_forward.6
$region0: #{gfm_forward.6}
  #allocation0 [shape = 'u32[]', space=smem, size = 0x4, offset = 0x4, fixed_abs, tag = 'smem constant byte address 0x4 - core index']
  #allocation1 [shape = 'u32[144,128]{1,0:T(1,128)}', space=vmem, size = 0x12000, scoped, tag = 'internal scratch']
  #allocation2 [shape = 's32[1]{0}', space=sflag, size = 0x4, scoped, tag = 'scratch operand']
  #allocation5 [shape = 's32[]', space=sflag, size = 0x4, offset = 0, fixed_abs, tag = 'sflag constant byte address 0x0 - dummy sync flag']
  %s0 = inlined_call_operand.vmem [shape: s32[256], index: 0, kind: input, shape index: {}]
  %s1 = inlined_call_operand.vmem [shape: f32[256,128], index: 1, kind: input, shape index: {}]
  %s2 = inlined_call_operand.vmem [shape: f32[512,128], index: 2, kind: input, shape index: {}, may-alias: {2,3}]
  %s3 = inlined_call_operand.vmem [shape: f32[512,128], index: 3, kind: output, shape index: {}, may-alias: {2,3}]
  %s4 = sld [smem:[#allocation0]]
  $region70: #{gfm_forward.6} parent=0
    _
  %s6 = ssub.s32 1, %s4
  %s7 = scalar_select 0, %s6, %s4
  $region1: #{gfm_forward.6} parent=0
    #allocation3 [shape = 'u8[1024]{0}', space=smem, size = 0x400, scoped, tag = 'input window, operand 0, single buffered']
    #allocation4 [shape = 's32[2]{0}', space=sflag, size = 0x8, scoped, tag = 'scoped memory for gfm_forward.6']
    %8 = vsyncpa [#allocation4], 0
    loop: start=0, step=1, limit=3
    $region2: #{gfm_forward.6} parent=1 // loop_pre_header
      _
    $region3: #{gfm_forward.6} parent=1 // loop_header
      %s10 = sphi 0, %s14
      %p11 = scmp.ge.s32.totalorder %s10, 3
      %s17 = sphi 0, %s17
      %s19 = sphi 0, %s17
      %s27 = sphi 0, %s19
      %s33 = sphi 0, %s35
      %s36 = sphi 0, %s33
      %s46 = sphi 0, %s36
    $region4: #{gfm_forward.6} parent=1 // loop_header_branch
      %13 = sbr.rel (%p11) target = $region8
    $region5: #{gfm_forward.6} parent=1 // loop_body
      %s15 = ssub.s32 %s10, 1
      %s16 = sadd.s32 %s10, 1
      %s18 = sadd.s32 %s17, 1
      %p20 = scmp.eq.s32.totalorder %s10, 1
      %p21 = scmp.ne.s32.totalorder %s17, %s19
      %p22 = scmp.eq.s32.totalorder %s10, 0
      %p23 = por %p21, %p22
      %p24 = scmp.ne.s32.totalorder %s17, %s19
      %p25 = scmp.eq.s32.totalorder %s15, 1
      %p26 = por %p24, %p25
      %p28 = scmp.ne.s32.totalorder %s19, %s27
      %p29 = scmp.eq.s32.totalorder %s15, 0
      %p30 = por %p28, %p29
      %s31 = ssub.s32 %s10, %s16
      %p32 = scmp.eq.s32.totalorder %s31, 0
      %s34 = sadd.s32 %s33, 1
      %s35 = scalar_select %p32, %s33, %s34
      %p37 = pneg %p32
      %p38 = scmp.eq.s32.totalorder %s10, 1
      %p39 = por %p37, %p38
      %p40 = scmp.ne.s32.totalorder %s33, %s36
      %p41 = scmp.eq.s32.totalorder %s10, 0
      %p42 = por %p40, %p41
      %p43 = scmp.ne.s32.totalorder %s33, %s36
      %p44 = scmp.eq.s32.totalorder %s15, 1
      %p45 = por %p43, %p44
      %p47 = scmp.ne.s32.totalorder %s36, %s46
      %p48 = scmp.eq.s32.totalorder %s15, 0
      %p49 = por %p47, %p48
      %p50 = scmp.le.s32.totalorder 1, %s10
      // Predicated region
      $region9: #{gfm_forward.6} parent=5 // pred_check
        %p51 = pneg %p50
      $region10: #{gfm_forward.6} parent=5 // pred_check_branch
        %53 = sbr.rel (%p51) target = $region12
      $region11: #{gfm_forward.6} parent=5 // pred_region
        %s54 = ssub.s32 %s10, 1
        // Predicated region
        $region13: #{gfm_forward.6} parent=11 // pred_check
          %p55 = pneg %p30
        $region14: #{gfm_forward.6} parent=11 // pred_check_branch
          %57 = sbr.rel (%p55) target = $region16
        $region15: #{gfm_forward.6} parent=11 // pred_region
          %s59 = ssub.s32 32, 32
          %60 = vsyncadd [#allocation4], %s59
          %s62 = sshll.u32 %s0, 4
          %s63 = int_to_ptr.vmem [resolvable:$true] %s62
          %65 = dma.vmem_to_smem %s63, 32, [#allocation3], [#allocation4]
        $region16: #{gfm_forward.6} parent=11 // pred_fallthru
          _
      $region12: #{gfm_forward.6} parent=5 // pred_fallthru
        _
      %p66 = scmp.lt.s32.totalorder %s10, 2
      // Predicated region
      $region17: #{gfm_forward.6} parent=5 // pred_check
        %p67 = pneg %p66
      $region18: #{gfm_forward.6} parent=5 // pred_check_branch
        %69 = sbr.rel (%p67) target = $region20
      $region19: #{gfm_forward.6} parent=5 // pred_region
        // Predicated region
        $region21: #{gfm_forward.6} parent=19 // pred_check
          %p70 = pneg %p42
        $region22: #{gfm_forward.6} parent=19 // pred_check_branch
          %72 = sbr.rel (%p70) target = $region24
        $region23: #{gfm_forward.6} parent=19 // pred_region
          %s73 = smul.u32 16, %s10
          %p74 = scmp.lt.s32.totalorder %s73, 31
          %s75 = scalar_select %p74, %s73, 31
          %s76 = smul.addr %s75, 8
          %s77 = scalar_lea.vmem %s1, %s76
          %s78 = smul.u32 16, %s10
        $region24: #{gfm_forward.6} parent=19 // pred_fallthru
          _
      $region20: #{gfm_forward.6} parent=5 // pred_fallthru
        _
      %p79 = scmp.le.s32.totalorder 1, %s10
      // Predicated region
      $region25: #{gfm_forward.6} parent=5 // pred_check
        %p80 = pneg %p79
      $region26: #{gfm_forward.6} parent=5 // pred_check_branch
        %82 = sbr.rel (%p80) target = $region28
      $region27: #{gfm_forward.6} parent=5 // pred_region
        %s83 = ssub.s32 %s10, 1
        // Predicated region
        $region29: #{gfm_forward.6} parent=27 // pred_check
          %p84 = pneg %p30
        $region30: #{gfm_forward.6} parent=27 // pred_check_branch
          %86 = sbr.rel (%p84) target = $region32
        $region31: #{gfm_forward.6} parent=27 // pred_region
          %87 = dma.done [#allocation4], 32
        $region32: #{gfm_forward.6} parent=27 // pred_fallthru
          _
        %88 = sfence
        %p89 = pneg %p30
        %p90 = pneg %p26
        %s91 = smul.u32 16, %s15
        %p92 = scmp.lt.s32.totalorder %s91, 31
        %s93 = scalar_select %p92, %s91, 31
        %s94 = smul.addr %s93, 8
        %s95 = scalar_lea.vmem %s1, %s94
        %p96 = pneg %p49
        %p97 = pneg %p45
        %s98 = smul.u32 16, %s15
        %p99 = scmp.lt.s32.totalorder %s98, 31
        %s100 = scalar_select %p99, %s98, 31
        %s101 = smul.addr %s100, 8
        %s102 = scalar_lea.vmem %s1, %s101
        %s103 = smul.u32 16, %s15
        %s104 = smul.u32 %s15, 128
        loop: start=0, step=1, limit=128
        $region33: #{gfm_forward.6} parent=27 // loop_pre_header
          _
        $region34: #{gfm_forward.6} parent=27 // loop_header
          %s106 = sphi 0, %s110
          %p107 = scmp.ge.s32.totalorder %s106, 128
        $region35: #{gfm_forward.6} parent=27 // loop_header_branch
          %109 = sbr.rel (%p107) target = $region39
        $region36: #{gfm_forward.6} parent=27 // loop_body
          %s111 = sadd.s32 %s104, %s106
          %s112 = sld [smem:[#allocation3 + %s111]]
          %s113 = scalar_lea.vmem %s102, %s106
          %s114 = scalar_lea.vmem %s3, %s112
          %p116 = scmp.lt.u32.totalorder 1, 8
          %p117 = pneg %p116
          // Predicated region
          $region40: #{gfm_forward.6} parent=36 // pred_check
            _
          $region41: #{gfm_forward.6} parent=36 // pred_check_branch
            %119 = sbr.rel (%p116) target = $region43
          $region42: #{gfm_forward.6} parent=36 // pred_region
            %s134 = sand.u32 1, 7
            %p135 = scmp.eq.s32.totalorder %s134, 0
            %p136 = pneg %p135
            // Predicated region
            $region55: #{gfm_forward.6} parent=42 // pred_check
              _
            $region56: #{gfm_forward.6} parent=42 // pred_check_branch
              %138 = sbr.rel (%p135) target = $region58
            $region57: #{gfm_forward.6} parent=42 // pred_region
              %s139 = sand.u32 1, 7
              %s140 = ssub.s32 1, %s139
              %s141 = scalar_lea.vmem %s113, %s140
              %s142 = ssub.s32 1, %s139
              %s143 = scalar_lea.vmem %s114, %s142
              %s144 = sshllo.u32 0, %s139
              loop: start=0, step=1, limit=1
              $region59: #{gfm_forward.6} parent=57 // loop_pre_header
                _
              $region60: #{gfm_forward.6} parent=57 // loop_header
                %s146 = sphi 0, %s150
                %p147 = scmp.ge.s32.totalorder %s146, 1
                %s151 = sphi %s141, %s141
                %s152 = sphi %s143, %s143
              $region61: #{gfm_forward.6} parent=57 // loop_header_branch
                %149 = sbr.rel (%p147) target = $region65
              $region62: #{gfm_forward.6} parent=57 // loop_body
                %v153 = vld [vmem:[%s151] sm:%s144]
                %154 = vst [vmem:[%s152] sm:%s144] %v153
              $region63: #{gfm_forward.6} parent=57 // loop_footer
                %s150 = sadd.s32 1, %s146
              $region64: #{gfm_forward.6} parent=57 // loop_footer_branch
                %145 = sbr.rel target = $region60
              $region65: #{gfm_forward.6} parent=57 // loop_exit
                _
            $region58: #{gfm_forward.6} parent=42 // pred_fallthru
              _
          $region43: #{gfm_forward.6} parent=36 // pred_fallthru
            _
          // Predicated region
          $region44: #{gfm_forward.6} parent=36 // pred_check
            %p120 = pneg %p116
          $region45: #{gfm_forward.6} parent=36 // pred_check_branch
            %122 = sbr.rel (%p120) target = $region47
          $region46: #{gfm_forward.6} parent=36 // pred_region
            %s123 = sshllo.u32 0, 1
            loop: start=0, step=1, limit=1
            $region48: #{gfm_forward.6} parent=46 // loop_pre_header
              _
            $region49: #{gfm_forward.6} parent=46 // loop_header
              %s125 = sphi 0, %s129
              %p126 = scmp.ge.s32.totalorder %s125, 1
              %s130 = sphi %s113, %s113
              %s131 = sphi %s114, %s114
            $region50: #{gfm_forward.6} parent=46 // loop_header_branch
              %128 = sbr.rel (%p126) target = $region54
            $region51: #{gfm_forward.6} parent=46 // loop_body
              %v132 = vld [vmem:[%s130] sm:%s123]
              %133 = vst [vmem:[%s131] sm:%s123] %v132
            $region52: #{gfm_forward.6} parent=46 // loop_footer
              %s129 = sadd.s32 1, %s125
            $region53: #{gfm_forward.6} parent=46 // loop_footer_branch
              %124 = sbr.rel target = $region49
            $region54: #{gfm_forward.6} parent=46 // loop_exit
              _
          $region47: #{gfm_forward.6} parent=36 // pred_fallthru
            _
          // Predicated region
          $region66: #{gfm_forward.6} parent=36 // pred_check
            _
          $region67: #{gfm_forward.6} parent=36 // pred_check_branch
            %157 = sbr.rel (0) target = $region69
          $region68: #{gfm_forward.6} parent=36 // pred_region
            %158 = vsyncadd [#allocation2], 16
          $region69: #{gfm_forward.6} parent=36 // pred_fallthru
            _
        $region37: #{gfm_forward.6} parent=27 // loop_footer
          %s110 = sadd.s32 1, %s106
        $region38: #{gfm_forward.6} parent=27 // loop_footer_branch
          %105 = sbr.rel target = $region34
        $region39: #{gfm_forward.6} parent=27 // loop_exit
          _
        %s159 = smul.u32 128, 1
        %s160 = sshll.u32 %s159, 4
        %161 = dma.done [#allocation2], %s160
      $region28: #{gfm_forward.6} parent=5 // pred_fallthru
        _
    $region6: #{gfm_forward.6} parent=1 // loop_footer
      %s14 = sadd.s32 1, %s10
    $region7: #{gfm_forward.6} parent=1 // loop_footer_branch
      %9 = sbr.rel target = $region3
    $region8: #{gfm_forward.6} parent=1 // loop_exit
      _
    %162 = vsyncpa [#allocation4], 1
    %s163 = scalar_lea.sflag [#allocation4], 1
    %164 = vsyncpa %s163, 1
  %165 = vsyncmov [#allocation2]
  %s166 = vpop.sfrf %165
  %p167 = scmp.eq.s32.totalorder %s166, 0
  %p168 = pneg %p167
  %170 = shalt.err (%p168)

// kernel: gfm_forward.5
$region0: #{gfm_forward.5}
  #allocation0 [shape = 'u32[]', space=smem, size = 0x4, offset = 0x4, fixed_abs, tag = 'smem constant byte address 0x4 - core index']
  #allocation1 [shape = 'u32[144,128]{1,0:T(1,128)}', space=vmem, size = 0x12000, scoped, tag = 'internal scratch']
  #allocation2 [shape = 's32[1]{0}', space=sflag, size = 0x4, scoped, tag = 'scoped memory for gfm_forward.5']
  #allocation3 [shape = 'u8[1024]{0}', space=smem, size = 0x400, scoped, tag = 'prefetched SMEM operand 0']
  #allocation4 [shape = 'u8[8192]{0}', space=smem, size = 0x2000, scoped, tag = 'prefetched SMEM operand 1']
  %s0 = inlined_call_operand.vmem [shape: s32[256], index: 0, kind: input, shape index: {}]
  %s1 = inlined_call_operand.vmem [shape: s32[2048], index: 1, kind: input, shape index: {}]
  %s2 = inlined_call_operand.vmem [shape: f32[512,128], index: 2, kind: input, shape index: {}]
  %s3 = inlined_call_operand.vmem [shape: f32[256,128], index: 3, kind: output, shape index: {}]
  %s4 = sld [smem:[#allocation0]]
  $region44: #{gfm_forward.5} parent=0
    _
  %s6 = ssub.s32 1, %s4
  %s7 = scalar_select 0, %s6, %s4
  %s8 = sshll.u32 %s0, 4
  %s9 = int_to_ptr.vmem [resolvable:$true] %s8
  %11 = dma.vmem_to_smem %s9, 32, [#allocation3], [#allocation2]
  %s12 = sshll.u32 %s1, 4
  %s13 = int_to_ptr.vmem [resolvable:$true] %s12
  %15 = dma.vmem_to_smem %s13, 256, [#allocation4], [#allocation2]
  %16 = dma.done [#allocation2], 288
  %17 = sfence
  loop: start=0, step=1, limit=4
  $region2: #{gfm_forward.5} parent=0 // loop_pre_header
    _
  $region3: #{gfm_forward.5} parent=0 // loop_header
    %s19 = sphi 0, %s23
    %p20 = scmp.ge.s32.totalorder %s19, 4
    %s27 = sphi 0, %s27
    %s29 = sphi 0, %s27
    %s30 = sphi 0, %s29
    %s44 = sphi 0, %s30
    %s50 = sphi 0, %s52
    %s53 = sphi 0, %s50
    %s54 = sphi 0, %s53
    %s70 = sphi 0, %s54
  $region4: #{gfm_forward.5} parent=0 // loop_header_branch
    %22 = sbr.rel (%p20) target = $region8
  $region5: #{gfm_forward.5} parent=0 // loop_body
    %s24 = ssub.s32 %s19, 1
    %s25 = ssub.s32 %s19, 2
    %s26 = sadd.s32 %s19, 1
    %s28 = sadd.s32 %s27, 1
    %p31 = scmp.eq.s32.totalorder %s19, 1
    %p32 = scmp.ne.s32.totalorder %s27, %s29
    %p33 = scmp.eq.s32.totalorder %s19, 0
    %p34 = por %p32, %p33
    %p35 = scmp.ne.s32.totalorder %s27, %s29
    %p36 = scmp.eq.s32.totalorder %s24, 1
    %p37 = por %p35, %p36
    %p38 = scmp.ne.s32.totalorder %s29, %s30
    %p39 = scmp.eq.s32.totalorder %s24, 0
    %p40 = por %p38, %p39
    %p41 = scmp.ne.s32.totalorder %s29, %s30
    %p42 = scmp.eq.s32.totalorder %s25, 1
    %p43 = por %p41, %p42
    %p45 = scmp.ne.s32.totalorder %s30, %s44
    %p46 = scmp.eq.s32.totalorder %s25, 0
    %p47 = por %p45, %p46
    %s48 = ssub.s32 %s19, %s26
    %p49 = scmp.eq.s32.totalorder %s48, 0
    %s51 = sadd.s32 %s50, 1
    %s52 = scalar_select %p49, %s50, %s51
    %p55 = pneg %p49
    %p56 = scmp.eq.s32.totalorder %s19, 1
    %p57 = por %p55, %p56
    %p58 = scmp.ne.s32.totalorder %s50, %s53
    %p59 = scmp.eq.s32.totalorder %s19, 0
    %p60 = por %p58, %p59
    %p61 = scmp.ne.s32.totalorder %s50, %s53
    %p62 = scmp.eq.s32.totalorder %s24, 1
    %p63 = por %p61, %p62
    %p64 = scmp.ne.s32.totalorder %s53, %s54
    %p65 = scmp.eq.s32.totalorder %s24, 0
    %p66 = por %p64, %p65
    %p67 = scmp.ne.s32.totalorder %s53, %s54
    %p68 = scmp.eq.s32.totalorder %s25, 1
    %p69 = por %p67, %p68
    %p71 = scmp.ne.s32.totalorder %s54, %s70
    %p72 = scmp.eq.s32.totalorder %s25, 0
    %p73 = por %p71, %p72
    %p74 = scmp.le.s32.totalorder 1, %s19
    %p75 = scmp.lt.s32.totalorder %s19, 3
    %p76 = pnand %p74, %p75
    %p77 = pneg %p76
    // Predicated region
    $region9: #{gfm_forward.5} parent=5 // pred_check
      _
    $region10: #{gfm_forward.5} parent=5 // pred_check_branch
      %79 = sbr.rel (%p76) target = $region12
    $region11: #{gfm_forward.5} parent=5 // pred_region
      %s80 = ssub.s32 %s19, 1
      // Predicated region
      $region13: #{gfm_forward.5} parent=11 // pred_check
        %p81 = pneg %p40
      $region14: #{gfm_forward.5} parent=11 // pred_check_branch
        %83 = sbr.rel (%p81) target = $region16
      $region15: #{gfm_forward.5} parent=11 // pred_region
        _
      $region16: #{gfm_forward.5} parent=11 // pred_fallthru
        _
    $region12: #{gfm_forward.5} parent=5 // pred_fallthru
      _
    %p84 = scmp.lt.s32.totalorder %s19, 2
    // Predicated region
    $region17: #{gfm_forward.5} parent=5 // pred_check
      %p85 = pneg %p84
    $region18: #{gfm_forward.5} parent=5 // pred_check_branch
      %87 = sbr.rel (%p85) target = $region20
    $region19: #{gfm_forward.5} parent=5 // pred_region
      _
    $region20: #{gfm_forward.5} parent=5 // pred_fallthru
      _
    %p88 = scmp.le.s32.totalorder 1, %s19
    %p89 = scmp.lt.s32.totalorder %s19, 3
    %p90 = pnand %p88, %p89
    %p91 = pneg %p90
    // Predicated region
    $region21: #{gfm_forward.5} parent=5 // pred_check
      _
    $region22: #{gfm_forward.5} parent=5 // pred_check_branch
      %93 = sbr.rel (%p90) target = $region24
    $region23: #{gfm_forward.5} parent=5 // pred_region
      %s94 = ssub.s32 %s19, 1
      %p95 = pneg %p40
      %p96 = pneg %p37
      %p97 = pneg %p66
      %p98 = pneg %p63
      %s99 = smul.u32 16, %s24
      %p100 = scmp.lt.s32.totalorder %s99, 31
      %s101 = scalar_select %p100, %s99, 31
      %s102 = smul.addr %s101, 8
      %s103 = scalar_lea.vmem %s3, %s102
      %s104 = smul.u32 16, %s24
      %p105 = scmp.lt.s32.totalorder %s104, 31
      %s106 = scalar_select %p105, %s104, 31
      %s107 = smul.addr %s106, 8
      %s108 = scalar_lea.vmem %s3, %s107
      %s109 = smul.u32 16, %s24
      %s110 = smul.u32 %s24, 128
      loop: start=0, step=1, limit=128
      $region25: #{gfm_forward.5} parent=23 // loop_pre_header
        _
      $region26: #{gfm_forward.5} parent=23 // loop_header
        %s112 = sphi 0, %s116
        %p113 = scmp.ge.s32.totalorder %s112, 128
      $region27: #{gfm_forward.5} parent=23 // loop_header_branch
        %115 = sbr.rel (%p113) target = $region31
      $region28: #{gfm_forward.5} parent=23 // loop_body
        %s117 = sadd.s32 %s110, %s112
        %s118 = sld [smem:[#allocation3 + %s117]]
        %s119 = scalar_lea.vmem %s2, %s118
        %v120 = vld [vmem:[%s119] sm:$0x1]
        %s121 = smul.u32 %s117, 8
        %s122 = sld [smem:[#allocation4 + %s121]]
        %s123 = scalar_lea.vmem %s2, %s122
        %v124 = vld [vmem:[%s123] sm:$0x1]
        %v125 = vadd.f32 %v124, 0.0
        %v126 = vmul.f32 %v124, %v124
        %v127 = vadd.f32 %v126, 0.0
        %s128 = sadd.s32 %s121, 1
        %s129 = sld [smem:[#allocation4 + %s128]]
        %s130 = scalar_lea.vmem %s2, %s129
        %v131 = vld [vmem:[%s130] sm:$0x1]
        %v132 = vadd.f32 %v125, %v131
        %v133 = vmul.f32 %v131, %v131
        %v134 = vadd.f32 %v127, %v133
        %s135 = sadd.s32 %s121, 2
        %s136 = sld [smem:[#allocation4 + %s135]]
        %s137 = scalar_lea.vmem %s2, %s136
        %v138 = vld [vmem:[%s137] sm:$0x1]
        %v139 = vadd.f32 %v132, %v138
        %v140 = vmul.f32 %v138, %v138
        %v141 = vadd.f32 %v134, %v140
        %s142 = sadd.s32 %s121, 3
        %s143 = sld [smem:[#allocation4 + %s142]]
        %s144 = scalar_lea.vmem %s2, %s143
        %v145 = vld [vmem:[%s144] sm:$0x1]
        %v146 = vadd.f32 %v139, %v145
        %v147 = vmul.f32 %v145, %v145
        %v148 = vadd.f32 %v141, %v147
        %s149 = sadd.s32 %s121, 4
        %s150 = sld [smem:[#allocation4 + %s149]]
        %s151 = scalar_lea.vmem %s2, %s150
        %v152 = vld [vmem:[%s151] sm:$0x1]
        %v153 = vadd.f32 %v146, %v152
        %v154 = vmul.f32 %v152, %v152
        %v155 = vadd.f32 %v148, %v154
        %s156 = sadd.s32 %s121, 5
        %s157 = sld [smem:[#allocation4 + %s156]]
        %s158 = scalar_lea.vmem %s2, %s157
        %v159 = vld [vmem:[%s158] sm:$0x1]
        %v160 = vadd.f32 %v153, %v159
        %v161 = vmul.f32 %v159, %v159
        %v162 = vadd.f32 %v155, %v161
        %s163 = sadd.s32 %s121, 6
        %s164 = sld [smem:[#allocation4 + %s163]]
        %s165 = scalar_lea.vmem %s2, %s164
        %v166 = vld [vmem:[%s165] sm:$0x1]
        %v167 = vadd.f32 %v160, %v166
        %v168 = vmul.f32 %v166, %v166
        %v169 = vadd.f32 %v162, %v168
        %s170 = sadd.s32 %s121, 7
        %s171 = sld [smem:[#allocation4 + %s170]]
        %s172 = scalar_lea.vmem %s2, %s171
        %v173 = vld [vmem:[%s172] sm:$0x1]
        %v174 = vadd.f32 %v167, %v173
        %v175 = vmul.f32 %v173, %v173
        %v176 = vadd.f32 %v169, %v175
        %v177 = vmul.f32 %v174, %v174
        %v178 = vsub.f32 %v177, %v176
        %v179 = vadd.f32 %v178, %v120
        %s180 = scalar_lea.vmem %s108, %s112
        %181 = vst [vmem:[%s180] sm:$0x1] %v179
      $region29: #{gfm_forward.5} parent=23 // loop_footer
        %s116 = sadd.s32 1, %s112
      $region30: #{gfm_forward.5} parent=23 // loop_footer_branch
        %111 = sbr.rel target = $region26
      $region31: #{gfm_forward.5} parent=23 // loop_exit
        _
      %s182 = smul.u32 16, %s24
      %p183 = scmp.lt.s32.totalorder %s182, 31
      %s184 = scalar_select %p183, %s182, 31
      %s185 = smul.addr %s184, 8
      %s186 = scalar_lea.vmem %s3, %s185
      // Predicated region
      $region32: #{gfm_forward.5} parent=23 // pred_check
        %p187 = pneg %p63
      $region33: #{gfm_forward.5} parent=23 // pred_check_branch
        %189 = sbr.rel (%p187) target = $region35
      $region34: #{gfm_forward.5} parent=23 // pred_region
        %s190 = smul.u32 16, %s24
      $region35: #{gfm_forward.5} parent=23 // pred_fallthru
        _
    $region24: #{gfm_forward.5} parent=5 // pred_fallthru
      _
    %p191 = scmp.le.s32.totalorder 2, %s19
    // Predicated region
    $region36: #{gfm_forward.5} parent=5 // pred_check
      %p192 = pneg %p191
    $region37: #{gfm_forward.5} parent=5 // pred_check_branch
      %194 = sbr.rel (%p192) target = $region39
    $region38: #{gfm_forward.5} parent=5 // pred_region
      %s195 = ssub.s32 %s19, 2
      // Predicated region
      $region40: #{gfm_forward.5} parent=38 // pred_check
        %p196 = pneg %p69
      $region41: #{gfm_forward.5} parent=38 // pred_check_branch
        %198 = sbr.rel (%p196) target = $region43
      $region42: #{gfm_forward.5} parent=38 // pred_region
        %s199 = smul.u32 16, %s25
        %p200 = scmp.lt.s32.totalorder %s199, 31
        %s201 = scalar_select %p200, %s199, 31
        %s202 = smul.addr %s201, 8
        %s203 = scalar_lea.vmem %s3, %s202
      $region43: #{gfm_forward.5} parent=38 // pred_fallthru
        _
    $region39: #{gfm_forward.5} parent=5 // pred_fallthru
      _
  $region6: #{gfm_forward.5} parent=0 // loop_footer
    %s23 = sadd.s32 1, %s19
  $region7: #{gfm_forward.5} parent=0 // loop_footer_branch
    %18 = sbr.rel target = $region3
  $region8: #{gfm_forward.5} parent=0 // loop_exit
    _

// kernel: gfm_forward.9
$region0: #{gfm_forward.9}
  #allocation0 [shape = 'u32[]', space=smem, size = 0x4, offset = 0x4, fixed_abs, tag = 'smem constant byte address 0x4 - core index']
  #allocation1 [shape = 'u32[144,128]{1,0:T(1,128)}', space=vmem, size = 0x12000, scoped, tag = 'internal scratch']
  #allocation2 [shape = 'f32[128,128]{1,0:T(8,128)}', space=vmem, size = 0x10000, scoped, tag = 'scratch operand']
  #allocation3 [shape = 'f32[128,128]{1,0:T(8,128)}', space=vmem, size = 0x10000, scoped, tag = 'scratch operand']
  #allocation4 [shape = 's32[1]{0}', space=sflag, size = 0x4, scoped, tag = 'scoped memory for gfm_forward.9']
  #allocation5 [shape = 'u8[1024]{0}', space=smem, size = 0x400, scoped, tag = 'prefetched SMEM operand 0']
  #allocation6 [shape = 'u8[1024]{0}', space=smem, size = 0x400, scoped, tag = 'prefetched SMEM operand 1']
  %s0 = inlined_call_operand.vmem [shape: s32[256], index: 0, kind: input, shape index: {}]
  %s1 = inlined_call_operand.vmem [shape: s32[256], index: 1, kind: input, shape index: {}]
  %s2 = inlined_call_operand.vmem [shape: f32[64,128], index: 2, kind: input, shape index: {}]
  %s3 = inlined_call_operand.vmem [shape: f32[512,128], index: 3, kind: input, shape index: {}]
  %s4 = inlined_call_operand.hbm [shape: f32[1,256], index: 4, kind: output, shape index: {}]
  %s5 = sld [smem:[#allocation0]]
  $region48: #{gfm_forward.9} parent=0
    _
  %s7 = ssub.s32 1, %s5
  %s8 = scalar_select 0, %s7, %s5
  %s9 = sshll.u32 %s0, 4
  %s10 = int_to_ptr.vmem [resolvable:$true] %s9
  %12 = dma.vmem_to_smem %s10, 32, [#allocation5], [#allocation4]
  %s13 = sshll.u32 %s1, 4
  %s14 = int_to_ptr.vmem [resolvable:$true] %s13
  %16 = dma.vmem_to_smem %s14, 32, [#allocation6], [#allocation4]
  %17 = dma.done [#allocation4], 64
  %18 = sfence
  $region1: #{gfm_forward.9} parent=0
    #allocation7 [shape = 'u8[1024]{0}', space=vmem, size = 0x400, scoped, tag = 'output window, operand 0']
    #allocation8 [shape = 's32[2]{0}', space=sflag, size = 0x8, scoped, tag = 'scoped memory for gfm_forward.9']
    %19 = vsyncpa [#allocation8], 0
    %s20 = scalar_lea.sflag [#allocation8], 1
    %21 = vsyncpa %s20, 0
    loop: start=0, step=1, limit=4
    $region2: #{gfm_forward.9} parent=1 // loop_pre_header
      _
    $region3: #{gfm_forward.9} parent=1 // loop_header
      %s23 = sphi 0, %s27
      %p24 = scmp.ge.s32.totalorder %s23, 4
      %s31 = sphi 0, %s31
      %s33 = sphi 0, %s31
      %s34 = sphi 0, %s33
      %s48 = sphi 0, %s34
      %s52 = sphi 0, %s52
      %s54 = sphi 0, %s52
      %s55 = sphi 0, %s54
      %s69 = sphi 0, %s55
      %s75 = sphi 0, %s77
      %s78 = sphi 0, %s75
      %s79 = sphi 0, %s78
      %s95 = sphi 0, %s79
    $region4: #{gfm_forward.9} parent=1 // loop_header_branch
      %26 = sbr.rel (%p24) target = $region8
    $region5: #{gfm_forward.9} parent=1 // loop_body
      %s28 = ssub.s32 %s23, 1
      %s29 = ssub.s32 %s23, 2
      %s30 = sadd.s32 %s23, 1
      %s32 = sadd.s32 %s31, 1
      %p35 = scmp.eq.s32.totalorder %s23, 1
      %p36 = scmp.ne.s32.totalorder %s31, %s33
      %p37 = scmp.eq.s32.totalorder %s23, 0
      %p38 = por %p36, %p37
      %p39 = scmp.ne.s32.totalorder %s31, %s33
      %p40 = scmp.eq.s32.totalorder %s28, 1
      %p41 = por %p39, %p40
      %p42 = scmp.ne.s32.totalorder %s33, %s34
      %p43 = scmp.eq.s32.totalorder %s28, 0
      %p44 = por %p42, %p43
      %p45 = scmp.ne.s32.totalorder %s33, %s34
      %p46 = scmp.eq.s32.totalorder %s29, 1
      %p47 = por %p45, %p46
      %p49 = scmp.ne.s32.totalorder %s34, %s48
      %p50 = scmp.eq.s32.totalorder %s29, 0
      %p51 = por %p49, %p50
      %s53 = sadd.s32 %s52, 1
      %p56 = scmp.eq.s32.totalorder %s23, 1
      %p57 = scmp.ne.s32.totalorder %s52, %s54
      %p58 = scmp.eq.s32.totalorder %s23, 0
      %p59 = por %p57, %p58
      %p60 = scmp.ne.s32.totalorder %s52, %s54
      %p61 = scmp.eq.s32.totalorder %s28, 1
      %p62 = por %p60, %p61
      %p63 = scmp.ne.s32.totalorder %s54, %s55
      %p64 = scmp.eq.s32.totalorder %s28, 0
      %p65 = por %p63, %p64
      %p66 = scmp.ne.s32.totalorder %s54, %s55
      %p67 = scmp.eq.s32.totalorder %s29, 1
      %p68 = por %p66, %p67
      %p70 = scmp.ne.s32.totalorder %s55, %s69
      %p71 = scmp.eq.s32.totalorder %s29, 0
      %p72 = por %p70, %p71
      %s73 = ssub.s32 %s23, %s30
      %p74 = scmp.eq.s32.totalorder %s73, 0
      %s76 = sadd.s32 %s75, 1
      %s77 = scalar_select %p74, %s75, %s76
      %p80 = pneg %p74
      %p81 = scmp.eq.s32.totalorder %s23, 1
      %p82 = por %p80, %p81
      %p83 = scmp.ne.s32.totalorder %s75, %s78
      %p84 = scmp.eq.s32.totalorder %s23, 0
      %p85 = por %p83, %p84
      %p86 = scmp.ne.s32.totalorder %s75, %s78
      %p87 = scmp.eq.s32.totalorder %s28, 1
      %p88 = por %p86, %p87
      %p89 = scmp.ne.s32.totalorder %s78, %s79
      %p90 = scmp.eq.s32.totalorder %s28, 0
      %p91 = por %p89, %p90
      %p92 = scmp.ne.s32.totalorder %s78, %s79
      %p93 = scmp.eq.s32.totalorder %s29, 1
      %p94 = por %p92, %p93
      %p96 = scmp.ne.s32.totalorder %s79, %s95
      %p97 = scmp.eq.s32.totalorder %s29, 0
      %p98 = por %p96, %p97
      %p99 = scmp.le.s32.totalorder 1, %s23
      %p100 = scmp.lt.s32.totalorder %s23, 3
      %p101 = pnand %p99, %p100
      %p102 = pneg %p101
      // Predicated region
      $region9: #{gfm_forward.9} parent=5 // pred_check
        _
      $region10: #{gfm_forward.9} parent=5 // pred_check_branch
        %104 = sbr.rel (%p101) target = $region12
      $region11: #{gfm_forward.9} parent=5 // pred_region
        %s105 = ssub.s32 %s23, 1
        // Predicated region
        $region13: #{gfm_forward.9} parent=11 // pred_check
          %p106 = pneg %p44
        $region14: #{gfm_forward.9} parent=11 // pred_check_branch
          %108 = sbr.rel (%p106) target = $region16
        $region15: #{gfm_forward.9} parent=11 // pred_region
          _
        $region16: #{gfm_forward.9} parent=11 // pred_fallthru
          _
        // Predicated region
        $region17: #{gfm_forward.9} parent=11 // pred_check
          %p109 = pneg %p65
        $region18: #{gfm_forward.9} parent=11 // pred_check_branch
          %111 = sbr.rel (%p109) target = $region20
        $region19: #{gfm_forward.9} parent=11 // pred_region
          _
        $region20: #{gfm_forward.9} parent=11 // pred_fallthru
          _
      $region12: #{gfm_forward.9} parent=5 // pred_fallthru
        _
      %p112 = scmp.lt.s32.totalorder %s23, 2
      // Predicated region
      $region21: #{gfm_forward.9} parent=5 // pred_check
        %p113 = pneg %p112
      $region22: #{gfm_forward.9} parent=5 // pred_check_branch
        %115 = sbr.rel (%p113) target = $region24
      $region23: #{gfm_forward.9} parent=5 // pred_region
        _
      $region24: #{gfm_forward.9} parent=5 // pred_fallthru
        _
      %p116 = scmp.le.s32.totalorder 1, %s23
      %p117 = scmp.lt.s32.totalorder %s23, 3
      %p118 = pnand %p116, %p117
      %p119 = pneg %p118
      // Predicated region
      $region25: #{gfm_forward.9} parent=5 // pred_check
        _
      $region26: #{gfm_forward.9} parent=5 // pred_check_branch
        %121 = sbr.rel (%p118) target = $region28
      $region27: #{gfm_forward.9} parent=5 // pred_region
        %s122 = ssub.s32 %s23, 1
        %p123 = pneg %p44
        %p124 = pneg %p41
        %p125 = pneg %p65
        %p126 = pneg %p62
        %p127 = pneg %p91
        %p128 = pneg %p88
        %s129 = sand.u32 %s78, 1
        %s130 = scalar_lea.sflag [#allocation8], %s129
        %s131 = sand.u32 %s78, 1
        %s132 = scalar_lea.vmem [#allocation7], %s131
        %s133 = smul.u32 %s28, 128
        loop: start=0, step=1, limit=128
        $region29: #{gfm_forward.9} parent=27 // loop_pre_header
          _
        $region30: #{gfm_forward.9} parent=27 // loop_header
          %s135 = sphi 0, %s139
          %p136 = scmp.ge.s32.totalorder %s135, 128
        $region31: #{gfm_forward.9} parent=27 // loop_header_branch
          %138 = sbr.rel (%p136) target = $region35
        $region32: #{gfm_forward.9} parent=27 // loop_body
          %s140 = sadd.s32 %s133, %s135
          %s141 = sld [smem:[#allocation5 + %s140]]
          %s142 = scalar_lea.vmem %s2, %s141
          %v143 = vld [vmem:[%s142] sm:$0x1]
          %s144 = scalar_lea.vmem [#allocation2], %s135
          %145 = vst [vmem:[%s144] sm:$0x1] %v143
          %s146 = sld [smem:[#allocation6 + %s140]]
          %s147 = scalar_lea.vmem %s3, %s146
          %v148 = vld [vmem:[%s147] sm:$0x1]
          %s149 = scalar_lea.vmem [#allocation3], %s135
          %150 = vst [vmem:[%s149] sm:$0x1] %v148
        $region33: #{gfm_forward.9} parent=27 // loop_footer
          %s139 = sadd.s32 1, %s135
        $region34: #{gfm_forward.9} parent=27 // loop_footer_branch
          %134 = sbr.rel target = $region30
        $region35: #{gfm_forward.9} parent=27 // loop_exit
          _
        %v151 = vld [vmem:[#allocation2] sm:$0xff]
        %v152 = vld [vmem:[#allocation2 + $0x8] sm:$0xff]
        %v153 = vld [vmem:[#allocation2 + $0x10] sm:$0xff]
        %v154 = vld [vmem:[#allocation2 + $0x18] sm:$0xff]
        %v155 = vld [vmem:[#allocation2 + $0x20] sm:$0xff]
        %v156 = vld [vmem:[#allocation2 + $0x28] sm:$0xff]
        %v157 = vld [vmem:[#allocation2 + $0x30] sm:$0xff]
        %v158 = vld [vmem:[#allocation2 + $0x38] sm:$0xff]
        %v159 = vld [vmem:[#allocation2 + $0x40] sm:$0xff]
        %v160 = vld [vmem:[#allocation2 + $0x48] sm:$0xff]
        %v161 = vld [vmem:[#allocation2 + $0x50] sm:$0xff]
        %v162 = vld [vmem:[#allocation2 + $0x58] sm:$0xff]
        %v163 = vld [vmem:[#allocation2 + $0x60] sm:$0xff]
        %v164 = vld [vmem:[#allocation2 + $0x68] sm:$0xff]
        %v165 = vld [vmem:[#allocation2 + $0x70] sm:$0xff]
        %v166 = vld [vmem:[#allocation2 + $0x78] sm:$0xff]
        %v167 = vld [vmem:[#allocation3] sm:$0xff]
        %v168 = vld [vmem:[#allocation3 + $0x8] sm:$0xff]
        %v169 = vld [vmem:[#allocation3 + $0x10] sm:$0xff]
        %v170 = vld [vmem:[#allocation3 + $0x18] sm:$0xff]
        %v171 = vld [vmem:[#allocation3 + $0x20] sm:$0xff]
        %v172 = vld [vmem:[#allocation3 + $0x28] sm:$0xff]
        %v173 = vld [vmem:[#allocation3 + $0x30] sm:$0xff]
        %v174 = vld [vmem:[#allocation3 + $0x38] sm:$0xff]
        %v175 = vld [vmem:[#allocation3 + $0x40] sm:$0xff]
        %v176 = vld [vmem:[#allocation3 + $0x48] sm:$0xff]
        %v177 = vld [vmem:[#allocation3 + $0x50] sm:$0xff]
        %v178 = vld [vmem:[#allocation3 + $0x58] sm:$0xff]
        %v179 = vld [vmem:[#allocation3 + $0x60] sm:$0xff]
        %v180 = vld [vmem:[#allocation3 + $0x68] sm:$0xff]
        %v181 = vld [vmem:[#allocation3 + $0x70] sm:$0xff]
        %v182 = vld [vmem:[#allocation3 + $0x78] sm:$0xff]
        %v183 = vmul.f32 %v151, %v167
        %v184 = vmul.f32 %v152, %v168
        %v185 = vmul.f32 %v153, %v169
        %v186 = vmul.f32 %v154, %v170
        %v187 = vmul.f32 %v155, %v171
        %v188 = vmul.f32 %v156, %v172
        %v189 = vmul.f32 %v157, %v173
        %v190 = vmul.f32 %v158, %v174
        %v191 = vmul.f32 %v159, %v175
        %v192 = vmul.f32 %v160, %v176
        %v193 = vmul.f32 %v161, %v177
        %v194 = vmul.f32 %v162, %v178
        %v195 = vmul.f32 %v163, %v179
        %v196 = vmul.f32 %v164, %v180
        %v197 = vmul.f32 %v165, %v181
        %v198 = vmul.f32 %v166, %v182
        %199 = vmatprep.subr.mxu0 0.0
        %200 = vmatpush1.xpose.msra.mxu0 %v183
        %201 = vmatprep.subr.mxu0 0.0
        %202 = vmatpush1.xpose.msra.mxu0 %v184
        %203 = vmatprep.subr.mxu0 0.0
        %204 = vmatpush1.xpose.msra.mxu0 %v185
        %205 = vmatprep.subr.mxu0 0.0
        %206 = vmatpush1.xpose.msra.mxu0 %v186
        %207 = vmatprep.subr.mxu0 0.0
        %208 = vmatpush1.xpose.msra.mxu0 %v187
        %209 = vmatprep.subr.mxu0 0.0
        %210 = vmatpush1.xpose.msra.mxu0 %v188
        %211 = vmatprep.subr.mxu0 0.0
        %212 = vmatpush1.xpose.msra.mxu0 %v189
        %213 = vmatprep.subr.mxu0 0.0
        %214 = vmatpush1.xpose.msra.mxu0 %v190
        %215 = vmatprep.subr.mxu0 0.0
        %216 = vmatpush1.xpose.msra.mxu0 %v191
        %217 = vmatprep.subr.mxu0 0.0
        %218 = vmatpush1.xpose.msra.mxu0 %v192
        %219 = vmatprep.subr.mxu0 0.0
        %220 = vmatpush1.xpose.msra.mxu0 %v193
        %221 = vmatprep.subr.mxu0 0.0
        %222 = vmatpush1.xpose.msra.mxu0 %v194
        %223 = vmatprep.subr.mxu0 0.0
        %224 = vmatpush1.xpose.msra.mxu0 %v195
        %225 = vmatprep.subr.mxu0 0.0
        %226 = vmatpush1.xpose.msra.mxu0 %v196
        %227 = vmatprep.subr.mxu0 0.0
        %228 = vmatpush1.xpose.msra.mxu0 %v197
        %229 = vmatprep.subr.mxu0 0.0
        %230 = vmatpush1.xpose.msra.mxu0 %v198
        %231 = vmatprep.subr.mxu0 0.0
        %232 = vmatpush1.xpose.msra.mxu0 0.0
        %233 = vmatprep.subr.mxu0 0.0
        %234 = vmatpush1.xpose.msra.mxu0 0.0
        %235 = vmatprep.subr.mxu0 0.0
        %236 = vmatpush1.xpose.msra.mxu0 0.0
        %237 = vmatprep.subr.mxu0 0.0
        %238 = vmatpush1.xpose.msra.mxu0 0.0
        %239 = vmatprep.subr.mxu0 0.0
        %240 = vmatpush1.xpose.msra.mxu0 0.0
        %241 = vmatprep.subr.mxu0 0.0
        %242 = vmatpush1.xpose.msra.mxu0 0.0
        %243 = vmatprep.subr.mxu0 0.0
        %244 = vmatpush1.xpose.msra.mxu0 0.0
        %245 = vmatprep.subr.mxu0 0.0
        %246 = vmatpush1.xpose.msra.mxu0 0.0
        %247 = vmatprep.subr.mxu0 0.0
        %248 = vmatpush1.xpose.msra.mxu0 0.0
        %249 = vmatprep.subr.mxu0 0.0
        %250 = vmatpush1.xpose.msra.mxu0 0.0
        %251 = vmatprep.subr.mxu0 0.0
        %252 = vmatpush1.xpose.msra.mxu0 0.0
        %253 = vmatprep.subr.mxu0 0.0
        %254 = vmatpush1.xpose.msra.mxu0 0.0
        %255 = vmatprep.subr.mxu0 0.0
        %256 = vmatpush1.xpose.msra.mxu0 0.0
        %257 = vmatprep.subr.mxu0 0.0
        %258 = vmatpush1.xpose.msra.mxu0 0.0
        %259 = vmatprep.subr.mxu0 0.0
        %260 = vmatpush1.xpose.msra.mxu0 0.0
        %261 = vmatprep.subr.mxu0 0.0
        %262 = vmatpush1.xpose.msra.mxu0 0.0
        %263 = vmatprep.mubr.f32.mxu0 0.0
        %264 = vmatmul.mubr.f32.gmra.mrb[0].mxu0 1.0
        %v265 = vpop.f32.mrb[0].mxu0
        %v266 = vadd.f32 0.0, %v265
        %v267 = vpop.f32.mrb[0].mxu0
        %268 = vdwg.mxu0
        %v269 = vmul.f32 %v151, %v151
        %v270 = vmul.f32 %v152, %v152
        %v271 = vmul.f32 %v153, %v153
        %v272 = vmul.f32 %v154, %v154
        %v273 = vmul.f32 %v155, %v155
        %v274 = vmul.f32 %v156, %v156
        %v275 = vmul.f32 %v157, %v157
        %v276 = vmul.f32 %v158, %v158
        %v277 = vmul.f32 %v159, %v159
        %v278 = vmul.f32 %v160, %v160
        %v279 = vmul.f32 %v161, %v161
        %v280 = vmul.f32 %v162, %v162
        %v281 = vmul.f32 %v163, %v163
        %v282 = vmul.f32 %v164, %v164
        %v283 = vmul.f32 %v165, %v165
        %v284 = vmul.f32 %v166, %v166
        %285 = vmatprep.subr.mxu0 0.0
        %286 = vmatpush1.xpose.msra.mxu0 %v269
        %287 = vmatprep.subr.mxu0 0.0
        %288 = vmatpush1.xpose.msra.mxu0 %v270
        %289 = vmatprep.subr.mxu0 0.0
        %290 = vmatpush1.xpose.msra.mxu0 %v271
        %291 = vmatprep.subr.mxu0 0.0
        %292 = vmatpush1.xpose.msra.mxu0 %v272
        %293 = vmatprep.subr.mxu0 0.0
        %294 = vmatpush1.xpose.msra.mxu0 %v273
        %295 = vmatprep.subr.mxu0 0.0
        %296 = vmatpush1.xpose.msra.mxu0 %v274
        %297 = vmatprep.subr.mxu0 0.0
        %298 = vmatpush1.xpose.msra.mxu0 %v275
        %299 = vmatprep.subr.mxu0 0.0
        %300 = vmatpush1.xpose.msra.mxu0 %v276
        %301 = vmatprep.subr.mxu0 0.0
        %302 = vmatpush1.xpose.msra.mxu0 %v277
        %303 = vmatprep.subr.mxu0 0.0
        %304 = vmatpush1.xpose.msra.mxu0 %v278
        %305 = vmatprep.subr.mxu0 0.0
        %306 = vmatpush1.xpose.msra.mxu0 %v279
        %307 = vmatprep.subr.mxu0 0.0
        %308 = vmatpush1.xpose.msra.mxu0 %v280
        %309 = vmatprep.subr.mxu0 0.0
        %310 = vmatpush1.xpose.msra.mxu0 %v281
        %311 = vmatprep.subr.mxu0 0.0
        %312 = vmatpush1.xpose.msra.mxu0 %v282
        %313 = vmatprep.subr.mxu0 0.0
        %314 = vmatpush1.xpose.msra.mxu0 %v283
        %315 = vmatprep.subr.mxu0 0.0
        %316 = vmatpush1.xpose.msra.mxu0 %v284
        %317 = vmatprep.subr.mxu0 0.0
        %318 = vmatpush1.xpose.msra.mxu0 0.0
        %319 = vmatprep.subr.mxu0 0.0
        %320 = vmatpush1.xpose.msra.mxu0 0.0
        %321 = vmatprep.subr.mxu0 0.0
        %322 = vmatpush1.xpose.msra.mxu0 0.0
        %323 = vmatprep.subr.mxu0 0.0
        %324 = vmatpush1.xpose.msra.mxu0 0.0
        %325 = vmatprep.subr.mxu0 0.0
        %326 = vmatpush1.xpose.msra.mxu0 0.0
        %327 = vmatprep.subr.mxu0 0.0
        %328 = vmatpush1.xpose.msra.mxu0 0.0
        %329 = vmatprep.subr.mxu0 0.0
        %330 = vmatpush1.xpose.msra.mxu0 0.0
        %331 = vmatprep.subr.mxu0 0.0
        %332 = vmatpush1.xpose.msra.mxu0 0.0
        %333 = vmatprep.subr.mxu0 0.0
        %334 = vmatpush1.xpose.msra.mxu0 0.0
        %335 = vmatprep.subr.mxu0 0.0
        %336 = vmatpush1.xpose.msra.mxu0 0.0
        %337 = vmatprep.subr.mxu0 0.0
        %338 = vmatpush1.xpose.msra.mxu0 0.0
        %339 = vmatprep.subr.mxu0 0.0
        %340 = vmatpush1.xpose.msra.mxu0 0.0
        %341 = vmatprep.subr.mxu0 0.0
        %342 = vmatpush1.xpose.msra.mxu0 0.0
        %343 = vmatprep.subr.mxu0 0.0
        %344 = vmatpush1.xpose.msra.mxu0 0.0
        %345 = vmatprep.subr.mxu0 0.0
        %346 = vmatpush1.xpose.msra.mxu0 0.0
        %347 = vmatprep.subr.mxu0 0.0
        %348 = vmatpush1.xpose.msra.mxu0 0.0
        %349 = vmatprep.mubr.f32.mxu0 0.0
        %350 = vmatmul.mubr.f32.gmra.mrb[0].mxu0 1.0
        %v351 = vpop.f32.mrb[0].mxu0
        %v352 = vadd.f32 0.0, %v351
        %v353 = vpop.f32.mrb[0].mxu0
        %354 = vdwg.mxu0
        %v355 = vrsqrt.pop %v352
        %v356 = vmul.f32 %v352, %v355
        %vm357 = vcmp.eq.f32.partialorder %v352, inf
        %v358 = vsel %vm357, %v352, %v356
        %vm359 = vcmp.eq.f32.partialorder %v352, 0.0
        %v360 = vand.u32 %v352, 2147483648
        %v361 = vsel %vm359, %v360, %v358
        %vm362 = vcmp.gt.f32.partialorder %v361, 1.0
        %v363 = vadd.f32 %v361, 1e-07
        %v364 = vrcp.pop %v363
        %v365 = vmul.f32 1.0, %v364
        %v366 = vsel %vm362, %v365, 1.0
        %v367 = vmul.f32 %v266, %v366
        %v368 = vxor.u32 %v367, 2147483648
        %v369 = vmul.f32 %v368, 1.442695
        %v370 = vpow.pop %v369
        %v371 = vadd.f32 %v370, 1.0
        %v372 = vrcp.pop %v371
        %v373 = vmul.f32 1.0, %v372
        %374 = vst [vmem:[%s132] sm:$0x1] %v373
        %s375 = sand.u32 %s78, 1
        %s376 = scalar_lea.sflag [#allocation8], %s375
        %s377 = sand.u32 %s78, 1
        %s378 = scalar_lea.vmem [#allocation7], %s377
        // Predicated region
        $region36: #{gfm_forward.9} parent=27 // pred_check
          %p379 = pneg %p88
        $region37: #{gfm_forward.9} parent=27 // pred_check_branch
          %381 = sbr.rel (%p379) target = $region39
        $region38: #{gfm_forward.9} parent=27 // pred_region
          %s383 = ssub.s32 16, 16
          %384 = vsyncadd %s376, %s383
          %s385 = smul.addr %s28, 16
          %s386 = scalar_lea.hbm %s4, %s385
          %s388 = sshll.u32 %s378, 4
          %s389 = int_to_ptr.vmem [resolvable:$true] %s388
          %391 = dma.vmem_to_hbm [thread:$0]  %s389, 16, %s386, %s376
        $region39: #{gfm_forward.9} parent=27 // pred_fallthru
          _
      $region28: #{gfm_forward.9} parent=5 // pred_fallthru
        _
      %p392 = scmp.le.s32.totalorder 2, %s23
      // Predicated region
      $region40: #{gfm_forward.9} parent=5 // pred_check
        %p393 = pneg %p392
      $region41: #{gfm_forward.9} parent=5 // pred_check_branch
        %395 = sbr.rel (%p393) target = $region43
      $region42: #{gfm_forward.9} parent=5 // pred_region
        %s396 = ssub.s32 %s23, 2
        // Predicated region
        $region44: #{gfm_forward.9} parent=42 // pred_check
          %p397 = pneg %p94
        $region45: #{gfm_forward.9} parent=42 // pred_check_branch
          %399 = sbr.rel (%p397) target = $region47
        $region46: #{gfm_forward.9} parent=42 // pred_region
          %s400 = sand.u32 %s79, 1
          %s401 = scalar_lea.sflag [#allocation8], %s400
          %s402 = sand.u32 %s79, 1
          %s403 = scalar_lea.vmem [#allocation7], %s402
          %404 = dma.done %s401, 16
        $region47: #{gfm_forward.9} parent=42 // pred_fallthru
          _
      $region43: #{gfm_forward.9} parent=5 // pred_fallthru
        _
    $region6: #{gfm_forward.9} parent=1 // loop_footer
      %s27 = sadd.s32 1, %s23
    $region7: #{gfm_forward.9} parent=1 // loop_footer_branch
      %22 = sbr.rel target = $region3
    $region8: #{gfm_forward.9} parent=1 // loop_exit
      _
    %405 = vsyncpa [#allocation8], 1
    %s406 = scalar_lea.sflag [#allocation8], 1
    %407 = vsyncpa %s406, 1

</llo_original>
